<compile_context>
chip_gen: v6e
topology: v6e:2x2x1
jax: 0.10.0
libtpu: 0.0.40
codegen_flags: <defaults>
</compile_context>

<pallas_src>
import jax
import jax.numpy as jnp
from jax.experimental import pallas as pl
from jax.experimental.pallas import tpu as pltpu


def _vmem_config():
    """Per-generation VMEM limit / tile budget / row target."""
    try:
        cap = int(pltpu.get_tpu_info().vmem_capacity_bytes)
    except Exception:  # pragma: no cover - conservative fallback
        cap = 64 * 2**20
    # Leave headroom for Mosaic internal scratch, semaphores, rounding.
    vmem_limit = min(cap * 3 // 4, 100 * 2**20)   # 48 MiB on v7x, 96 MiB on v5e/v6e
    tile_budget = vmem_limit * 3 // 4             # double-buffered tile bytes
    target_rows = 2048 if cap > 80 * 2**20 else 1024
    return vmem_limit, tile_budget, target_rows


def _pick_tile(n, h, w, cin, cs, cout, x_item, s_item, o_item, w_item,
               target_rows, tile_budget, min_parallel_blocks=2):
    """Choose (th, tw): H-band height and W-tile width.

    Constraints: th | H; tw | W and tw % 8 == 0 (or tw == W) for the (8,128)
    rule; double-buffered tile bytes <= budget; th*tw <= row target; and
    n*(H/th)*(W/tw) >= min_parallel_blocks (keep both v7x TCs busy).
    Relaxes parallelism, then returns the smallest legal tile as last resort.
    """
    ct = cs + cout
    const_bytes = 2 * (4 * cin * cout * w_item + 8 * cout)   # weights + bias (2 bufs)

    def tile_bytes(th, tw):
        rows = th * tw
        return const_bytes + 2 * rows * (cin * x_item + 2 * cs * s_item + 2 * ct * o_item)

    th_cands = [t for t in range(1, h + 1) if h % t == 0]
    tw_cands = sorted({w} | {t for t in range(8, w, 8) if w % t == 0})

    for need_blocks in (True, False):
        best = None
        for tw in tw_cands:
            for th in th_cands:
                rows = th * tw
                if rows > target_rows:
                    continue
                if tile_bytes(th, tw) > tile_budget:
                    continue
                if need_blocks and n * (h // th) * (w // tw) < min_parallel_blocks:
                    continue
                if (best is None or rows > best[0] * best[1]
                        or (rows == best[0] * best[1] and tw > best[1])):
                    best = (th, tw)
        if best is not None:
            return best
    # Even the minimal tile misses the budget/target: best effort.
    return 1, min(tw_cands)


def _upcat_kernel(x_ref, w_ref, b_ref, s_ref, o_ref):
    # x_ref: (th, tw, Cin)        down band, native dtype (cast in-kernel)
    # w_ref: (2, Cin, 2*Cout)     deconv weights, VMEM-resident, cols = (kw, cout)
    # b_ref: (1, 2*Cout)          f32 bias replicated for both kw
    # s_ref: (th, tw, 2*Cs)       skip band (this kh), cols = (kw, cs)
    # o_ref: (th, tw, 2*Ct)       output band, cols = (kw, [skip | up])
    th, tw, cin = x_ref.shape
    cout = w_ref.shape[-1] // 2
    cs = s_ref.shape[-1] // 2
    ct = cs + cout
    kh = pl.program_id(3)
    x = x_ref[...].astype(w_ref.dtype).reshape(th * tw, cin)      # free major reshape
    y = jnp.dot(x, w_ref[kh], preferred_element_type=jnp.float32) + b_ref[...]
    y = y.reshape(th, tw, 2 * cout)
    s = s_ref[...]
    # Direct slice-stores (no concat temp): per-pixel channel order is
    # [skip(kw0) | up(kw0) | skip(kw1) | up(kw1)].
    o_ref[:, :, :cs] = s[:, :, :cs].astype(o_ref.dtype)
    o_ref[:, :, cs:ct] = y[:, :, :cout].astype(o_ref.dtype)
    o_ref[:, :, ct:ct + cs] = s[:, :, cs:].astype(o_ref.dtype)
    o_ref[:, :, ct + cs:] = y[:, :, cout:].astype(o_ref.dtype)


def _deconv_kernel(x_ref, w_ref, b_ref, o_ref):
    # Same as above without the fused skip concat (rare shape-mismatch path).
    th, tw, cin = x_ref.shape
    kh = pl.program_id(3)
    x = x_ref[...].astype(w_ref.dtype).reshape(th * tw, cin)
    y = jnp.dot(x, w_ref[kh], preferred_element_type=jnp.float32) + b_ref[...]
    o_ref[...] = y.reshape(th, tw, -1).astype(o_ref.dtype)


def _up_pallas(down_nhwc, weight, bias, skip_nhwc=None, *,
               out_dtype=jnp.float32, matmul_dtype=jnp.bfloat16):
    """ConvTranspose2d(k=2, s=2) with fused depth-to-space (and optionally the
    channel concat with the skip tensor).

    down_nhwc : (N, H, W, Cin)            any float dtype (cast in-kernel)
    weight    : (Cin, Cout, 2, 2) float32 (PyTorch ConvTranspose2d layout)
    bias      : (Cout,)
    skip_nhwc : optional (N, 2H, 2W, Cs)  any float dtype (cast on store)
    returns   : (N, 2H, 2W, Cs + Cout) out_dtype (skip channels first) when
                skip_nhwc is given, else (N, 2H, 2W, Cout).
    """
    n, h, w, cin = down_nhwc.shape
    cout = weight.shape[1]
    cs = 0 if skip_nhwc is None else skip_nhwc.shape[-1]
    ct = cs + cout

    # (Cin, Cout, kh, kw) -> (kh, Cin, kw*Cout); tiny one-time prep + cast.
    w_k = jnp.transpose(weight, (2, 0, 3, 1)).reshape(2, cin, 2 * cout)
    w_k = w_k.astype(matmul_dtype)
    b2 = jnp.tile(bias.astype(jnp.float32), 2).reshape(1, 2 * cout)

    vmem_limit, tile_budget, target_rows = _vmem_config()
    x_item = jnp.dtype(down_nhwc.dtype).itemsize
    s_item = 0 if skip_nhwc is None else jnp.dtype(skip_nhwc.dtype).itemsize
    o_item = jnp.dtype(out_dtype).itemsize
    w_item = jnp.dtype(matmul_dtype).itemsize
    th, tw = _pick_tile(n, h, w, cin, cs, cout, x_item, s_item, o_item, w_item,
                        target_rows, tile_budget)

    grid = (n, h // th, w // tw, 2)   # kh innermost -> the x band is reused across kh

    in_specs = [
        pl.BlockSpec((None, th, tw, cin), lambda ni, hb, wb, kh: (ni, hb, wb, 0)),
        # Whole deconv weight stays resident in VMEM (constant block index).
        pl.BlockSpec((2, cin, 2 * cout), lambda ni, hb, wb, kh: (0, 0, 0)),
        pl.BlockSpec((1, 2 * cout), lambda ni, hb, wb, kh: (0, 0)),
    ]
    operands = [down_nhwc, w_k, b2]
    if skip_nhwc is not None:
        # (N, 2H, 2W, Cs) -> (N, H, 2, W, 2*Cs) is a free row-major reshape.
        skip6 = skip_nhwc.reshape(n, h, 2, w, 2 * cs)
        in_specs.append(
            pl.BlockSpec((None, th, None, tw, 2 * cs),
                         lambda ni, hb, wb, kh: (ni, hb, kh, wb, 0)))
        operands.append(skip6)
        kernel = _upcat_kernel
    else:
        kernel = _deconv_kernel

    flops = 8 * n * h * w * cin * cout          # 2 * MACs over both (kh, kw)
    bytes_accessed = (down_nhwc.size * x_item + w_k.size * w_item + b2.size * 4
                      + (0 if skip_nhwc is None else skip_nhwc.size * s_item)
                      + n * h * w * 4 * ct * o_item)

    out6 = pl.pallas_call(
        kernel,
        out_shape=jax.ShapeDtypeStruct((n, h, 2, w, 2 * ct), out_dtype),
        grid_spec=pltpu.PrefetchScalarGridSpec(
            num_scalar_prefetch=0,
            grid=grid,
            in_specs=in_specs,
            out_specs=pl.BlockSpec((None, th, None, tw, 2 * ct),
                                   lambda ni, hb, wb, kh: (ni, hb, kh, wb, 0)),
        ),
        compiler_params=pltpu.CompilerParams(
            dimension_semantics=("parallel", "parallel", "parallel", "arbitrary"),
            vmem_limit_bytes=vmem_limit,
        ),
        cost_estimate=pl.CostEstimate(flops=flops, transcendentals=0,
                                      bytes_accessed=int(bytes_accessed)),
    )(*operands)

    # (N, H, 2, W, 2*Ct) -> (N, 2H, 2W, Ct): free row-major reshape.  This IS
    # the depth-to-space (+ concat) — no extra HBM pass.
    return out6.reshape(n, 2 * h, 2 * w, ct)


def upcat_forward_nhwc(inputs_nhwc, down_nhwc, weight, bias, *, rand_key,
                       out_dtype=jnp.float32):
    """UpCat.forward (is_deconv=True) on NHWC tensors (no layout transposes)."""
    n, h, w, _ = down_nhwc.shape

    if inputs_nhwc.shape[1] == 2 * h and inputs_nhwc.shape[2] == 2 * w:
        # Common nnU-Net case: spatial dims line up -> fully fused single
        # pallas_call (deconv + depth-to-space + channel concat).
        return _up_pallas(down_nhwc, weight, bias, skip_nhwc=inputs_nhwc,
                          out_dtype=out_dtype)

    # Rare shape-mismatch path: Pallas deconv, then random padding + concat in
    # plain JAX, branch-for-branch like the PyTorch reference.
    # TODO(synk): torch.rand's RNG stream has no JAX/Pallas equivalent; the
    # random padding uses jax.random.uniform (same [0,1) semantics, different
    # values) and stays outside the kernel.
    outputs = _up_pallas(down_nhwc, weight, bias, out_dtype=out_dtype)
    inputs = inputs_nhwc.astype(outputs.dtype)
    k1, k2, k3, k4 = jax.random.split(rand_key, 4)
    # NCHW dim 3 (W) == NHWC axis 2; NCHW dim 2 (H) == NHWC axis 1.
    offset = inputs.shape[2] - outputs.shape[2]
    if offset == 1:
        add = jax.random.uniform(
            k1, (outputs.shape[0], outputs.shape[1], 1, outputs.shape[3]))
        outputs = jnp.concatenate([outputs, add.astype(outputs.dtype)], axis=2)
    elif offset > 1:
        add = jax.random.uniform(
            k1, (outputs.shape[0], outputs.shape[1], offset, outputs.shape[3]))
        outputs = jnp.concatenate([outputs, add.astype(outputs.dtype)], axis=2)
        add = jax.random.uniform(
            k2, (outputs.shape[0], offset, outputs.shape[2], outputs.shape[3]))
        outputs = jnp.concatenate([outputs, add.astype(outputs.dtype)], axis=1)
    offset1 = inputs.shape[2] - outputs.shape[2]
    if offset1 < 0:
        # NOTE: the PyTorch reference pads with -offset (not -offset1) here;
        # kept faithful to the original module.
        add = jax.random.uniform(
            k3, (inputs.shape[0], inputs.shape[1], -offset, inputs.shape[3]))
        inputs = jnp.concatenate([inputs, add.astype(inputs.dtype)], axis=2)
        add = jax.random.uniform(
            k4, (inputs.shape[0], -offset, inputs.shape[2], inputs.shape[3]))
        inputs = jnp.concatenate([inputs, add.astype(inputs.dtype)], axis=1)
    return jnp.concatenate([inputs, outputs], axis=-1)


def upcat_forward(inputs_nchw, down_nchw, weight, bias, *, rand_key):
    """UpCat.forward (is_deconv=True) with the PyTorch NCHW interface.

    The NCHW<->NHWC transposes here exist only for interface parity with the
    PyTorch module; an NHWC-native model should call `upcat_forward_nhwc`
    directly and skip these three full-tensor layout passes.
    """
    inputs = jnp.transpose(inputs_nchw, (0, 2, 3, 1))
    down = jnp.transpose(down_nchw, (0, 2, 3, 1))
    out = upcat_forward_nhwc(inputs, down, weight, bias, rand_key=rand_key)
    return jnp.transpose(out, (0, 3, 1, 2))


if __name__ == "__main__":
    key = jax.random.PRNGKey(0)
    k_w, k_b, k_down, k_skip, k_rand = jax.random.split(key, 5)

    in_feat, out_feat = 8, 4
    N, H, W = 2, 8, 8
    skip_C, skip_H, skip_W = 4, 16, 16  # spatial matches 2H, 2W -> fused path

    # ConvTranspose2d parameter layout: (Cin, Cout, kH, kW)
    weight = 0.1 * jax.random.normal(k_w, (in_feat, out_feat, 2, 2), jnp.float32)
    bias = 0.1 * jax.random.normal(k_b, (out_feat,), jnp.float32)

    down_outputs = jax.random.normal(k_down, (N, in_feat, H, W), jnp.float32)
    inputs = jax.random.normal(k_skip, (N, skip_C, skip_H, skip_W), jnp.float32)

    out = jax.jit(upcat_forward)(inputs, down_outputs, weight, bias,
                                 rand_key=k_rand)
    out = jax.block_until_ready(out)

    # Pure-JAX reference (same bf16 operand rounding as the kernel, f32 accum).
    t = jnp.einsum('nchw,cokl->nohwkl',
                   down_outputs.astype(jnp.bfloat16),
                   weight.astype(jnp.bfloat16),
                   preferred_element_type=jnp.float32)
    up_ref = t.transpose(0, 1, 2, 4, 3, 5).reshape(N, out_feat, 2 * H, 2 * W)
    up_ref = up_ref + bias[None, :, None, None]
    ref = jnp.concatenate([inputs, up_ref], axis=1)

    assert out.shape == (N, skip_C + out_feat, 2 * H, 2 * W), out.shape
    assert jnp.allclose(out, ref, atol=1e-2, rtol=1e-2), (
        float(jnp.max(jnp.abs(out - ref))))
    print("KERNEL_OK")
</pallas_src>

<mosaic_0001>
module attributes {stable_mosaic.version = 11 : i64} {
  func.func @_upcat_kernel(%arg0: i32, %arg1: i32, %arg2: i32, %arg3: i32, %arg4: memref<1x8x8x8xf32, #tpu.memory_space<vmem>>, %arg5: memref<2x8x8xbf16, #tpu.memory_space<vmem>>, %arg6: memref<1x8xf32, #tpu.memory_space<vmem>>, %arg7: memref<1x8x1x8x8xf32, #tpu.memory_space<vmem>>, %arg8: memref<1x8x1x8x16xf32, #tpu.memory_space<vmem>>) attributes {dimension_semantics = [#tpu.dimension_semantics<parallel>, #tpu.dimension_semantics<parallel>, #tpu.dimension_semantics<parallel>, #tpu.dimension_semantics<arbitrary>], iteration_bounds = array<i64: 2, 1, 1, 2>, scalar_prefetch = 0 : i64, scratch_operands = 0 : i64, tpu.core_type = #tpu.core_type<tc>, window_params = [{transform_indices = @transform_0, window_bounds = array<i64: 1, 8, 8, 8>}, {pipeline_mode = #tpu.pipeline_mode<synchronous>, transform_indices = @transform_1, window_bounds = array<i64: 2, 8, 8>}, {pipeline_mode = #tpu.pipeline_mode<synchronous>, transform_indices = @transform_2, window_bounds = array<i64: 1, 8>}, {transform_indices = @transform_3, window_bounds = array<i64: 1, 8, 1, 8, 8>}, {transform_indices = @transform_4, window_bounds = array<i64: 1, 8, 1, 8, 16>}]} {
    %c0 = arith.constant 0 : index
    %c0_0 = arith.constant 0 : index
    %c0_1 = arith.constant 0 : index
    %c0_2 = arith.constant 0 : index
    %0 = vector.load %arg4[%c0, %c0_0, %c0_1, %c0_2] : memref<1x8x8x8xf32, #tpu.memory_space<vmem>>, vector<1x8x8x8xf32>
    %1 = vector.shape_cast %0 : vector<1x8x8x8xf32> to vector<8x8x8xf32>
    %2 = arith.truncf %1 : vector<8x8x8xf32> to vector<8x8x8xbf16>
    %3 = vector.shape_cast %2 : vector<8x8x8xbf16> to vector<64x8xbf16>
    %4 = arith.index_cast %arg3 : i32 to index
    %c0_3 = arith.constant 0 : index
    %c0_4 = arith.constant 0 : index
    %5 = vector.load %arg5[%4, %c0_3, %c0_4] : memref<2x8x8xbf16, #tpu.memory_space<vmem>>, vector<1x8x8xbf16>
    %6 = vector.shape_cast %5 : vector<1x8x8xbf16> to vector<8x8xbf16>
    %cst = arith.constant dense<0.000000e+00> : vector<64x8xf32>
    %7 = tpu.matmul %3, %6, %cst {dimension_numbers = #tpu.dot_dimension_numbers<[1], [0], [0], [1], [0, 0, 1, 1], [], []>} : vector<64x8xbf16>, vector<8x8xbf16>, vector<64x8xf32> -> vector<64x8xf32>
    %c0_5 = arith.constant 0 : index
    %c0_6 = arith.constant 0 : index
    %8 = vector.load %arg6[%c0_5, %c0_6] : memref<1x8xf32, #tpu.memory_space<vmem>>, vector<1x8xf32>
    %9 = vector.broadcast %8 : vector<1x8xf32> to vector<64x8xf32>
    %10 = arith.addf %7, %9 : vector<64x8xf32>
    %11 = vector.shape_cast %10 : vector<64x8xf32> to vector<8x8x8xf32>
    %c0_7 = arith.constant 0 : index
    %c0_8 = arith.constant 0 : index
    %c0_9 = arith.constant 0 : index
    %c0_10 = arith.constant 0 : index
    %c0_11 = arith.constant 0 : index
    %12 = vector.load %arg7[%c0_7, %c0_8, %c0_9, %c0_10, %c0_11] : memref<1x8x1x8x8xf32, #tpu.memory_space<vmem>>, vector<1x8x1x8x8xf32>
    %13 = vector.shape_cast %12 : vector<1x8x1x8x8xf32> to vector<8x8x8xf32>
    %14 = vector.extract_strided_slice %13 {offsets = [0, 0, 0], sizes = [8, 8, 4], strides = [1, 1, 1]} : vector<8x8x8xf32> to vector<8x8x4xf32>
    %c0_12 = arith.constant 0 : index
    %c0_13 = arith.constant 0 : index
    %c0_14 = arith.constant 0 : index
    %c0_15 = arith.constant 0 : index
    %c0_16 = arith.constant 0 : index
    %15 = vector.load %arg8[%c0_12, %c0_13, %c0_14, %c0_15, %c0_16] : memref<1x8x1x8x16xf32, #tpu.memory_space<vmem>>, vector<1x8x1x8x4xf32>
    %16 = vector.shape_cast %15 : vector<1x8x1x8x4xf32> to vector<8x8x4xf32>
    %17 = vector.shape_cast %14 : vector<8x8x4xf32> to vector<1x8x1x8x4xf32>
    tpu.vector_store %arg8[%c0_12, %c0_13, %c0_14, %c0_15, %c0_16], %17 {strides = array<i32>} : memref<1x8x1x8x16xf32, #tpu.memory_space<vmem>>, vector<1x8x1x8x4xf32>,
    %18 = vector.extract_strided_slice %11 {offsets = [0, 0, 0], sizes = [8, 8, 4], strides = [1, 1, 1]} : vector<8x8x8xf32> to vector<8x8x4xf32>
    %c0_17 = arith.constant 0 : index
    %c0_18 = arith.constant 0 : index
    %c0_19 = arith.constant 0 : index
    %c0_20 = arith.constant 0 : index
    %c4 = arith.constant 4 : index
    %19 = vector.load %arg8[%c0_17, %c0_18, %c0_19, %c0_20, %c4] : memref<1x8x1x8x16xf32, #tpu.memory_space<vmem>>, vector<1x8x1x8x4xf32>
    %20 = vector.shape_cast %19 : vector<1x8x1x8x4xf32> to vector<8x8x4xf32>
    %21 = vector.shape_cast %18 : vector<8x8x4xf32> to vector<1x8x1x8x4xf32>
    tpu.vector_store %arg8[%c0_17, %c0_18, %c0_19, %c0_20, %c4], %21 {strides = array<i32>} : memref<1x8x1x8x16xf32, #tpu.memory_space<vmem>>, vector<1x8x1x8x4xf32>,
    %22 = vector.extract_strided_slice %13 {offsets = [0, 0, 4], sizes = [8, 8, 4], strides = [1, 1, 1]} : vector<8x8x8xf32> to vector<8x8x4xf32>
    %c0_21 = arith.constant 0 : index
    %c0_22 = arith.constant 0 : index
    %c0_23 = arith.constant 0 : index
    %c0_24 = arith.constant 0 : index
    %c8 = arith.constant 8 : index
    %23 = vector.load %arg8[%c0_21, %c0_22, %c0_23, %c0_24, %c8] : memref<1x8x1x8x16xf32, #tpu.memory_space<vmem>>, vector<1x8x1x8x4xf32>
    %24 = vector.shape_cast %23 : vector<1x8x1x8x4xf32> to vector<8x8x4xf32>
    %25 = vector.shape_cast %22 : vector<8x8x4xf32> to vector<1x8x1x8x4xf32>
    tpu.vector_store %arg8[%c0_21, %c0_22, %c0_23, %c0_24, %c8], %25 {strides = array<i32>} : memref<1x8x1x8x16xf32, #tpu.memory_space<vmem>>, vector<1x8x1x8x4xf32>,
    %26 = vector.extract_strided_slice %11 {offsets = [0, 0, 4], sizes = [8, 8, 4], strides = [1, 1, 1]} : vector<8x8x8xf32> to vector<8x8x4xf32>
    %c0_25 = arith.constant 0 : index
    %c0_26 = arith.constant 0 : index
    %c0_27 = arith.constant 0 : index
    %c0_28 = arith.constant 0 : index
    %c12 = arith.constant 12 : index
    %27 = vector.load %arg8[%c0_25, %c0_26, %c0_27, %c0_28, %c12] : memref<1x8x1x8x16xf32, #tpu.memory_space<vmem>>, vector<1x8x1x8x4xf32>
    %28 = vector.shape_cast %27 : vector<1x8x1x8x4xf32> to vector<8x8x4xf32>
    %29 = vector.shape_cast %26 : vector<8x8x4xf32> to vector<1x8x1x8x4xf32>
    tpu.vector_store %arg8[%c0_25, %c0_26, %c0_27, %c0_28, %c12], %29 {strides = array<i32>} : memref<1x8x1x8x16xf32, #tpu.memory_space<vmem>>, vector<1x8x1x8x4xf32>,
    return
  }
  func.func @transform_0(%arg0: i32, %arg1: i32, %arg2: i32, %arg3: i32) -> (i32, i32, i32, i32) {
    %c0_i32 = arith.constant 0 : i32
    %c0_i32_0 = arith.constant 0 : i32
    return %arg0, %arg1, %arg2, %c0_i32 : i32, i32, i32, i32
  }
  func.func @transform_1(%arg0: i32, %arg1: i32, %arg2: i32, %arg3: i32) -> (i32, i32, i32) {
    %c0_i32 = arith.constant 0 : i32
    %c0_i32_0 = arith.constant 0 : i32
    %c0_i32_1 = arith.constant 0 : i32
    %c0_i32_2 = arith.constant 0 : i32
    return %c0_i32, %c0_i32_0, %c0_i32_1 : i32, i32, i32
  }
  func.func @transform_2(%arg0: i32, %arg1: i32, %arg2: i32, %arg3: i32) -> (i32, i32) {
    %c0_i32 = arith.constant 0 : i32
    %c0_i32_0 = arith.constant 0 : i32
    %c0_i32_1 = arith.constant 0 : i32
    return %c0_i32, %c0_i32_0 : i32, i32
  }
  func.func @transform_3(%arg0: i32, %arg1: i32, %arg2: i32, %arg3: i32) -> (i32, i32, i32, i32, i32) {
    %c0_i32 = arith.constant 0 : i32
    %c0_i32_0 = arith.constant 0 : i32
    return %arg0, %arg1, %arg3, %arg2, %c0_i32 : i32, i32, i32, i32, i32
  }
  func.func @transform_4(%arg0: i32, %arg1: i32, %arg2: i32, %arg3: i32) -> (i32, i32, i32, i32, i32) {
    %c0_i32 = arith.constant 0 : i32
    %c0_i32_0 = arith.constant 0 : i32
    return %arg0, %arg1, %arg3, %arg2, %c0_i32 : i32, i32, i32, i32, i32
  }
}

</mosaic_0001>

<llo_original>
// kernel: tile.8
$region0: #{tile.8}
  #allocation0 [shape = 's32[1]{0}', space=sflag, size = 0x4, scoped, tag = 'scoped memory for tile.8']
  %s0 = inlined_call_operand.vmem [shape: f32[4], index: 0, kind: input, shape index: {}]
  %s1 = inlined_call_operand.vmem [shape: f32[2,4], index: 1, kind: output, shape index: {}]
  // Predicated region
  $region2: #{tile.8} parent=0 // pred_check
    _
  $region3: #{tile.8} parent=0 // pred_check_branch
    %3 = sbr.rel (0) target = $region5
  $region4: #{tile.8} parent=0 // pred_region
    _
  $region5: #{tile.8} parent=0 // pred_fallthru
    _
  %v4 = vld [vmem:[%s0] ss:$0 sm:$0xff]
  %5 = vst [vmem:[%s1] sm:$0x3] %v4

// kernel: tile.9
$region0: #{tile.9}
  %s0 = inlined_call_operand.vmem [shape: f32[2,4], index: 0, kind: input, shape index: {}]
  %s1 = inlined_call_operand.vmem [shape: f32[1,8], index: 1, kind: output, shape index: {}]
  $region1: #{tile.9} parent=0
    #allocation0 [shape = 'u8[4096]{0}', space=vmem, size = 0x1000, scoped, tag = 'scoped mem for output reshape']
    #allocation1 [shape = 'u8[4096]{0}', space=vmem, size = 0x1000, scoped, tag = 'scoped mem for input reshape']
    %s3 = sshll.u32 1, 2
    %s4 = ssub.s32 %s3, 1
    %v5 = vld [vmem:[%s0] sm:%s4]
    %6 = vst [vmem:[#allocation1] sm:%s4] %v5
    %v7 = vld [vmem:[#allocation1] sm:$0x1]
    %vm8 = vcmask 31744
    %9 = vst.msk [vmem:[#allocation0] sm:$0x1] %vm8, %v7
    %s10 = scalar_lea.vmem [#allocation1], 1
    %v11 = vld [vmem:[%s10] sm:$0x1]
    %12 = vrot.lane.b32.xlu0 %v11, 4
    %v13 = vpop.permute.xlu0 %12
    %vm14 = vcmask 64544
    %15 = vst.msk [vmem:[#allocation0] sm:$0x1] %vm14, %v13
    %s17 = sshll.u32 1, 1
    %s18 = ssub.s32 %s17, 1
    %v20 = vld [vmem:[#allocation0] sm:%s18]
    %s21 = sshll.u32 1, 1
    %s22 = ssub.s32 %s21, 1
    %23 = vst [vmem:[%s1] sm:%s22] %v20

// kernel: upcat_forward.1
$region0: #{upcat_forward.1}
  #allocation0 [shape = 'u32[]', space=smem, size = 0x4, offset = 0x4, fixed_abs, tag = 'smem constant byte address 0x4 - core index']
  #allocation1 [shape = 'u32[144,128]{1,0:T(1,128)}', space=vmem, size = 0x12000, scoped, tag = 'internal scratch']
  %s0 = inlined_call_operand.vmem [shape: f32[2,8,8,8], index: 0, kind: input, shape index: {}]
  %s1 = inlined_call_operand.vmem [shape: bf16[2,8,8], index: 1, kind: input, shape index: {}]
  %s2 = inlined_call_operand.vmem [shape: f32[1,8], index: 2, kind: input, shape index: {}]
  %s3 = inlined_call_operand.vmem [shape: f32[2,8,2,8,8], index: 3, kind: input, shape index: {}]
  %s4 = inlined_call_operand.vmem [shape: f32[2,8,2,8,16], index: 4, kind: output, shape index: {}]
  %s5 = sld [smem:[#allocation0]]
  $region121: #{upcat_forward.1} parent=0
    _
  %s7 = ssub.s32 1, %s5
  %s8 = scalar_select 0, %s7, %s5
  $region1: #{upcat_forward.1} parent=0
    #allocation2 [shape = 'u8[65536]{0}', space=vmem, size = 0x10000, scoped, tag = 'input window, operand 3']
    #allocation3 [shape = 'u8[65536]{0}', space=vmem, size = 0x10000, scoped, tag = 'output window, operand 0']
    loop: start=0, step=1, limit=6
    $region2: #{upcat_forward.1} parent=1 // loop_pre_header
      _
    $region3: #{upcat_forward.1} parent=1 // loop_header
      %s10 = sphi 0, %s14
      %p11 = scmp.ge.s32.totalorder %s10, 6
      %s17 = sphi 0, %s43
      %s18 = sphi 0, %s39
      %s19 = sphi 0, %s35
      %s20 = sphi 0, %s31
      %s21 = sphi 0, %s17
      %s22 = sphi 0, %s18
      %s23 = sphi 0, %s19
      %s24 = sphi 0, %s20
      %s25 = sphi 0, %s21
      %s26 = sphi 0, %s22
      %s27 = sphi 0, %s23
      %s28 = sphi 0, %s24
      %s50 = sphi 0, %s52
      %s53 = sphi 0, %s50
      %s54 = sphi 0, %s53
      %s70 = sphi 0, %s54
      %s74 = sphi 0, %s74
      %s76 = sphi 0, %s74
      %s77 = sphi 0, %s76
      %s91 = sphi 0, %s77
      %s95 = sphi 0, %s95
      %s97 = sphi 0, %s95
      %s98 = sphi 0, %s97
      %s112 = sphi 0, %s98
      %s124 = sphi 0, %s126
      %s127 = sphi 0, %s124
      %s128 = sphi 0, %s127
      %s144 = sphi 0, %s128
      %s156 = sphi 0, %s158
      %s159 = sphi 0, %s156
      %s160 = sphi 0, %s159
      %s176 = sphi 0, %s160
    $region4: #{upcat_forward.1} parent=1 // loop_header_branch
      %13 = sbr.rel (%p11) target = $region8
    $region5: #{upcat_forward.1} parent=1 // loop_body
      %s15 = ssub.s32 %s10, 1
      %s16 = ssub.s32 %s10, 2
      %s29 = sadd.s32 1, %s20
      %p30 = scmp.ge.s32.totalorder %s29, 2
      %s31 = scalar_select %p30, 0, %s29
      %s32 = sadd.s32 1, %s19
      %s33 = scalar_select %p30, %s32, %s19
      %p34 = scmp.ge.s32.totalorder %s33, 1
      %s35 = scalar_select %p34, 0, %s33
      %s36 = sadd.s32 1, %s18
      %s37 = scalar_select %p34, %s36, %s18
      %p38 = scmp.ge.s32.totalorder %s37, 1
      %s39 = scalar_select %p38, 0, %s37
      %s40 = sadd.s32 1, %s17
      %s41 = scalar_select %p38, %s40, %s17
      %p42 = scmp.ge.s32.totalorder %s41, 2
      %s43 = scalar_select %p42, 0, %s41
      %s44 = ssub.s32 %s17, %s43
      %s45 = ssub.s32 %s18, %s39
      %s46 = sor.u32 %s44, %s45
      %s47 = ssub.s32 %s19, %s35
      %s48 = sor.u32 %s46, %s47
      %p49 = scmp.eq.s32.totalorder %s48, 0
      %s51 = sadd.s32 %s50, 1
      %s52 = scalar_select %p49, %s50, %s51
      %p55 = pneg %p49
      %p56 = scmp.eq.s32.totalorder %s10, 3
      %p57 = por %p55, %p56
      %p58 = scmp.ne.s32.totalorder %s50, %s53
      %p59 = scmp.eq.s32.totalorder %s10, 0
      %p60 = por %p58, %p59
      %p61 = scmp.ne.s32.totalorder %s50, %s53
      %p62 = scmp.eq.s32.totalorder %s15, 3
      %p63 = por %p61, %p62
      %p64 = scmp.ne.s32.totalorder %s53, %s54
      %p65 = scmp.eq.s32.totalorder %s15, 0
      %p66 = por %p64, %p65
      %p67 = scmp.ne.s32.totalorder %s53, %s54
      %p68 = scmp.eq.s32.totalorder %s16, 3
      %p69 = por %p67, %p68
      %p71 = scmp.ne.s32.totalorder %s54, %s70
      %p72 = scmp.eq.s32.totalorder %s16, 0
      %p73 = por %p71, %p72
      %s75 = sadd.s32 %s74, 1
      %p78 = scmp.eq.s32.totalorder %s10, 3
      %p79 = scmp.ne.s32.totalorder %s74, %s76
      %p80 = scmp.eq.s32.totalorder %s10, 0
      %p81 = por %p79, %p80
      %p82 = scmp.ne.s32.totalorder %s74, %s76
      %p83 = scmp.eq.s32.totalorder %s15, 3
      %p84 = por %p82, %p83
      %p85 = scmp.ne.s32.totalorder %s76, %s77
      %p86 = scmp.eq.s32.totalorder %s15, 0
      %p87 = por %p85, %p86
      %p88 = scmp.ne.s32.totalorder %s76, %s77
      %p89 = scmp.eq.s32.totalorder %s16, 3
      %p90 = por %p88, %p89
      %p92 = scmp.ne.s32.totalorder %s77, %s91
      %p93 = scmp.eq.s32.totalorder %s16, 0
      %p94 = por %p92, %p93
      %s96 = sadd.s32 %s95, 1
      %p99 = scmp.eq.s32.totalorder %s10, 3
      %p100 = scmp.ne.s32.totalorder %s95, %s97
      %p101 = scmp.eq.s32.totalorder %s10, 0
      %p102 = por %p100, %p101
      %p103 = scmp.ne.s32.totalorder %s95, %s97
      %p104 = scmp.eq.s32.totalorder %s15, 3
      %p105 = por %p103, %p104
      %p106 = scmp.ne.s32.totalorder %s97, %s98
      %p107 = scmp.eq.s32.totalorder %s15, 0
      %p108 = por %p106, %p107
      %p109 = scmp.ne.s32.totalorder %s97, %s98
      %p110 = scmp.eq.s32.totalorder %s16, 3
      %p111 = por %p109, %p110
      %p113 = scmp.ne.s32.totalorder %s98, %s112
      %p114 = scmp.eq.s32.totalorder %s16, 0
      %p115 = por %p113, %p114
      %s116 = ssub.s32 %s17, %s43
      %s117 = ssub.s32 %s18, %s39
      %s118 = sor.u32 %s116, %s117
      %s119 = ssub.s32 %s20, %s31
      %s120 = sor.u32 %s118, %s119
      %s121 = ssub.s32 %s19, %s35
      %s122 = sor.u32 %s120, %s121
      %p123 = scmp.eq.s32.totalorder %s122, 0
      %s125 = sadd.s32 %s124, 1
      %s126 = scalar_select %p123, %s124, %s125
      %p129 = pneg %p123
      %p130 = scmp.eq.s32.totalorder %s10, 3
      %p131 = por %p129, %p130
      %p132 = scmp.ne.s32.totalorder %s124, %s127
      %p133 = scmp.eq.s32.totalorder %s10, 0
      %p134 = por %p132, %p133
      %p135 = scmp.ne.s32.totalorder %s124, %s127
      %p136 = scmp.eq.s32.totalorder %s15, 3
      %p137 = por %p135, %p136
      %p138 = scmp.ne.s32.totalorder %s127, %s128
      %p139 = scmp.eq.s32.totalorder %s15, 0
      %p140 = por %p138, %p139
      %p141 = scmp.ne.s32.totalorder %s127, %s128
      %p142 = scmp.eq.s32.totalorder %s16, 3
      %p143 = por %p141, %p142
      %p145 = scmp.ne.s32.totalorder %s128, %s144
      %p146 = scmp.eq.s32.totalorder %s16, 0
      %p147 = por %p145, %p146
      %s148 = ssub.s32 %s17, %s43
      %s149 = ssub.s32 %s18, %s39
      %s150 = sor.u32 %s148, %s149
      %s151 = ssub.s32 %s20, %s31
      %s152 = sor.u32 %s150, %s151
      %s153 = ssub.s32 %s19, %s35
      %s154 = sor.u32 %s152, %s153
      %p155 = scmp.eq.s32.totalorder %s154, 0
      %s157 = sadd.s32 %s156, 1
      %s158 = scalar_select %p155, %s156, %s157
      %p161 = pneg %p155
      %p162 = scmp.eq.s32.totalorder %s10, 3
      %p163 = por %p161, %p162
      %p164 = scmp.ne.s32.totalorder %s156, %s159
      %p165 = scmp.eq.s32.totalorder %s10, 0
      %p166 = por %p164, %p165
      %p167 = scmp.ne.s32.totalorder %s156, %s159
      %p168 = scmp.eq.s32.totalorder %s15, 3
      %p169 = por %p167, %p168
      %p170 = scmp.ne.s32.totalorder %s159, %s160
      %p171 = scmp.eq.s32.totalorder %s15, 0
      %p172 = por %p170, %p171
      %p173 = scmp.ne.s32.totalorder %s159, %s160
      %p174 = scmp.eq.s32.totalorder %s16, 3
      %p175 = por %p173, %p174
      %p177 = scmp.ne.s32.totalorder %s160, %s176
      %p178 = scmp.eq.s32.totalorder %s16, 0
      %p179 = por %p177, %p178
      %p180 = scmp.le.s32.totalorder 1, %s10
      %p181 = scmp.lt.s32.totalorder %s10, 5
      %p182 = pnand %p180, %p181
      %p183 = pneg %p182
      // Predicated region
      $region9: #{upcat_forward.1} parent=5 // pred_check
        _
      $region10: #{upcat_forward.1} parent=5 // pred_check_branch
        %185 = sbr.rel (%p182) target = $region12
      $region11: #{upcat_forward.1} parent=5 // pred_region
        %s186 = ssub.s32 %s10, 1
        // Predicated region
        $region13: #{upcat_forward.1} parent=11 // pred_check
          %p187 = pneg %p87
        $region14: #{upcat_forward.1} parent=11 // pred_check_branch
          %189 = sbr.rel (%p187) target = $region16
        $region15: #{upcat_forward.1} parent=11 // pred_region
          _
        $region16: #{upcat_forward.1} parent=11 // pred_fallthru
          _
        // Predicated region
        $region17: #{upcat_forward.1} parent=11 // pred_check
          %p190 = pneg %p108
        $region18: #{upcat_forward.1} parent=11 // pred_check_branch
          %192 = sbr.rel (%p190) target = $region20
        $region19: #{upcat_forward.1} parent=11 // pred_region
          _
        $region20: #{upcat_forward.1} parent=11 // pred_fallthru
          _
      $region12: #{upcat_forward.1} parent=5 // pred_fallthru
        _
      %p193 = scmp.lt.s32.totalorder %s10, 4
      // Predicated region
      $region21: #{upcat_forward.1} parent=5 // pred_check
        %p194 = pneg %p193
      $region22: #{upcat_forward.1} parent=5 // pred_check_branch
        %196 = sbr.rel (%p194) target = $region24
      $region23: #{upcat_forward.1} parent=5 // pred_region
        // Predicated region
        $region25: #{upcat_forward.1} parent=23 // pred_check
          %p197 = pneg %p60
        $region26: #{upcat_forward.1} parent=23 // pred_check_branch
          %199 = sbr.rel (%p197) target = $region28
        $region27: #{upcat_forward.1} parent=23 // pred_region
          %s200 = smul.u32 8, %s18
          %p201 = scmp.lt.s32.totalorder %s17, 1
          %s202 = scalar_select %p201, %s17, 1
          %p203 = scmp.lt.s32.totalorder %s200, 7
          %s204 = scalar_select %p203, %s200, 7
          %p205 = scmp.lt.s32.totalorder %s19, 0
          %s206 = scalar_select %p205, %s19, 0
          %s207 = sadd.s32 %s206, %s204
          %s208 = smul.addr %s202, 8
          %s209 = sadd.s32 %s207, %s208
          %s210 = smul.addr %s209, 8
          %s211 = scalar_lea.vmem %s0, %s210
          %s212 = smul.u32 8, %s18
        $region28: #{upcat_forward.1} parent=23 // pred_fallthru
          _
        // Predicated region
        $region29: #{upcat_forward.1} parent=23 // pred_check
          %p213 = pneg %p134
        $region30: #{upcat_forward.1} parent=23 // pred_check_branch
          %215 = sbr.rel (%p213) target = $region32
        $region31: #{upcat_forward.1} parent=23 // pred_region
          %s216 = sand.u32 %s124, 1
          %s217 = sand.u32 %s124, 1
          %s218 = smul.addr %s217, 64
          %s219 = scalar_lea.vmem [#allocation2], %s218
          %s220 = smul.u32 8, %s18
          %s221 = sadd.s32 %s19, %s20
          %s222 = smul.addr %s220, 2
          %s223 = sadd.s32 %s221, %s222
          %s224 = smul.addr %s17, 16
          %s225 = sadd.s32 %s223, %s224
          %s226 = smul.addr %s225, 8
          %s227 = scalar_lea.vmem %s3, %s226
          // Predicated region
          $region33: #{upcat_forward.1} parent=31 // pred_check
            _
          $region34: #{upcat_forward.1} parent=31 // pred_check_branch
            %229 = sbr.rel (0) target = $region36
          $region35: #{upcat_forward.1} parent=31 // pred_region
            // Predicated region
            $region37: #{upcat_forward.1} parent=35 // pred_check
              _
            $region38: #{upcat_forward.1} parent=35 // pred_check_branch
              %231 = sbr.rel (0) target = $region40
            $region39: #{upcat_forward.1} parent=35 // pred_region
              // Predicated region
              $region52: #{upcat_forward.1} parent=39 // pred_check
                _
              $region53: #{upcat_forward.1} parent=39 // pred_check_branch
                %261 = sbr.rel (0) target = $region55
              $region54: #{upcat_forward.1} parent=39 // pred_region
                loop: start=0, step=1, limit=1
                $region56: #{upcat_forward.1} parent=54 // loop_pre_header
                  _
                $region57: #{upcat_forward.1} parent=54 // loop_header
                  %s263 = sphi 0, %s267
                  %p264 = scmp.ge.s32.totalorder %s263, 1
                  %s268 = sphi %s227, %s227
                  %s269 = sphi %s219, %s219
                $region58: #{upcat_forward.1} parent=54 // loop_header_branch
                  %266 = sbr.rel (%p264) target = $region62
                $region59: #{upcat_forward.1} parent=54 // loop_body
                  %v270 = vld [vmem:[%s268] sm:$0xff]
                  %271 = vst [vmem:[%s269] sm:$0xff] %v270
                  %v272 = vld [vmem:[%s268 + $0x10] sm:$0xff]
                  %273 = vst [vmem:[%s269 + $0x8] sm:$0xff] %v272
                  %v274 = vld [vmem:[%s268 + $0x20] sm:$0xff]
                  %275 = vst [vmem:[%s269 + $0x10] sm:$0xff] %v274
                  %v276 = vld [vmem:[%s268 + $0x30] sm:$0xff]
                  %277 = vst [vmem:[%s269 + $0x18] sm:$0xff] %v276
                  %v278 = vld [vmem:[%s268 + $0x40] sm:$0xff]
                  %279 = vst [vmem:[%s269 + $0x20] sm:$0xff] %v278
                  %v280 = vld [vmem:[%s268 + $0x50] sm:$0xff]
                  %281 = vst [vmem:[%s269 + $0x28] sm:$0xff] %v280
                  %v282 = vld [vmem:[%s268 + $0x60] sm:$0xff]
                  %283 = vst [vmem:[%s269 + $0x30] sm:$0xff] %v282
                  %v284 = vld [vmem:[%s268 + $0x70] sm:$0xff]
                  %285 = vst [vmem:[%s269 + $0x38] sm:$0xff] %v284
                $region60: #{upcat_forward.1} parent=54 // loop_footer
                  %s267 = sadd.s32 1, %s263
                $region61: #{upcat_forward.1} parent=54 // loop_footer_branch
                  %262 = sbr.rel target = $region57
                $region62: #{upcat_forward.1} parent=54 // loop_exit
                  _
              $region55: #{upcat_forward.1} parent=39 // pred_fallthru
                _
              // Predicated region
              $region63: #{upcat_forward.1} parent=39 // pred_check
                _
              $region64: #{upcat_forward.1} parent=39 // pred_check_branch
                %287 = sbr.rel target = $region66
              $region65: #{upcat_forward.1} parent=39 // pred_region
                _
              $region66: #{upcat_forward.1} parent=39 // pred_fallthru
                _
            $region40: #{upcat_forward.1} parent=35 // pred_fallthru
              _
            // Predicated region
            $region41: #{upcat_forward.1} parent=35 // pred_check
              _
            $region42: #{upcat_forward.1} parent=35 // pred_check_branch
              %233 = sbr.rel target = $region44
            $region43: #{upcat_forward.1} parent=35 // pred_region
              %s235 = ssub.s32 256, 1
              loop: start=0, step=1, limit=1
              $region45: #{upcat_forward.1} parent=43 // loop_pre_header
                _
              $region46: #{upcat_forward.1} parent=43 // loop_header
                %s237 = sphi 0, %s241
                %p238 = scmp.ge.s32.totalorder %s237, 1
                %s242 = sphi %s227, %s227
                %s243 = sphi %s219, %s219
              $region47: #{upcat_forward.1} parent=43 // loop_header_branch
                %240 = sbr.rel (%p238) target = $region51
              $region48: #{upcat_forward.1} parent=43 // loop_body
                %v244 = vld [vmem:[%s242] sm:%s235]
                %245 = vst [vmem:[%s243] sm:%s235] %v244
                %v246 = vld [vmem:[%s242 + $0x10] sm:%s235]
                %247 = vst [vmem:[%s243 + $0x8] sm:%s235] %v246
                %v248 = vld [vmem:[%s242 + $0x20] sm:%s235]
                %249 = vst [vmem:[%s243 + $0x10] sm:%s235] %v248
                %v250 = vld [vmem:[%s242 + $0x30] sm:%s235]
                %251 = vst [vmem:[%s243 + $0x18] sm:%s235] %v250
                %v252 = vld [vmem:[%s242 + $0x40] sm:%s235]
                %253 = vst [vmem:[%s243 + $0x20] sm:%s235] %v252
                %v254 = vld [vmem:[%s242 + $0x50] sm:%s235]
                %255 = vst [vmem:[%s243 + $0x28] sm:%s235] %v254
                %v256 = vld [vmem:[%s242 + $0x60] sm:%s235]
                %257 = vst [vmem:[%s243 + $0x30] sm:%s235] %v256
                %v258 = vld [vmem:[%s242 + $0x70] sm:%s235]
                %259 = vst [vmem:[%s243 + $0x38] sm:%s235] %v258
              $region49: #{upcat_forward.1} parent=43 // loop_footer
                %s241 = sadd.s32 1, %s237
              $region50: #{upcat_forward.1} parent=43 // loop_footer_branch
                %236 = sbr.rel target = $region46
              $region51: #{upcat_forward.1} parent=43 // loop_exit
                _
            $region44: #{upcat_forward.1} parent=35 // pred_fallthru
              _
          $region36: #{upcat_forward.1} parent=31 // pred_fallthru
            _
          %288 = vnop
        $region32: #{upcat_forward.1} parent=23 // pred_fallthru
          _
      $region24: #{upcat_forward.1} parent=5 // pred_fallthru
        _
      %p289 = scmp.le.s32.totalorder 1, %s10
      %p290 = scmp.lt.s32.totalorder %s10, 5
      %p291 = pnand %p289, %p290
      %p292 = pneg %p291
      // Predicated region
      $region67: #{upcat_forward.1} parent=5 // pred_check
        _
      $region68: #{upcat_forward.1} parent=5 // pred_check_branch
        %294 = sbr.rel (%p291) target = $region70
      $region69: #{upcat_forward.1} parent=5 // pred_region
        %s295 = ssub.s32 %s10, 1
        %s296 = sand.u32 %s127, 1
        %s297 = sand.u32 %s127, 1
        %s298 = smul.addr %s297, 64
        %s299 = scalar_lea.vmem [#allocation2], %s298
        // Predicated region
        $region71: #{upcat_forward.1} parent=69 // pred_check
          %p300 = pneg %p140
        $region72: #{upcat_forward.1} parent=69 // pred_check_branch
          %302 = sbr.rel (%p300) target = $region74
        $region73: #{upcat_forward.1} parent=69 // pred_region
          _
        $region74: #{upcat_forward.1} parent=69 // pred_fallthru
          _
        %s303 = smul.u32 8, %s22
        %p304 = scmp.lt.s32.totalorder %s21, 1
        %s305 = scalar_select %p304, %s21, 1
        %p306 = scmp.lt.s32.totalorder %s303, 7
        %s307 = scalar_select %p306, %s303, 7
        %p308 = scmp.lt.s32.totalorder %s23, 0
        %s309 = scalar_select %p308, %s23, 0
        %s310 = sadd.s32 %s309, %s307
        %s311 = smul.addr %s305, 8
        %s312 = sadd.s32 %s310, %s311
        %s313 = smul.addr %s312, 8
        %s314 = scalar_lea.vmem %s0, %s313
        %p315 = pneg %p66
        %p316 = pneg %p63
        %p317 = pneg %p87
        %p318 = pneg %p84
        %p319 = pneg %p108
        %p320 = pneg %p105
        %s321 = sand.u32 %s127, 1
        %s322 = sand.u32 %s127, 1
        %s323 = smul.addr %s322, 64
        %s324 = scalar_lea.vmem [#allocation2], %s323
        %p325 = pneg %p140
        %p326 = pneg %p137
        %p327 = pneg %p172
        %p328 = pneg %p169
        %s329 = sand.u32 %s159, 1
        %s330 = sand.u32 %s159, 1
        %s331 = smul.addr %s330, 64
        %s332 = scalar_lea.vmem [#allocation3], %s331
        %s333 = smul.u32 8, %s22
        %p334 = scmp.lt.s32.totalorder %s21, 1
        %s335 = scalar_select %p334, %s21, 1
        %p336 = scmp.lt.s32.totalorder %s333, 7
        %s337 = scalar_select %p336, %s333, 7
        %p338 = scmp.lt.s32.totalorder %s23, 0
        %s339 = scalar_select %p338, %s23, 0
        %s340 = sadd.s32 %s339, %s337
        %s341 = smul.addr %s335, 8
        %s342 = sadd.s32 %s340, %s341
        %s343 = smul.addr %s342, 8
        %s344 = scalar_lea.vmem %s0, %s343
        %s345 = smul.u32 8, %s22
        %s346 = smul.u32 8, %s22
        %s347 = smul.u32 8, %s22
        %v349 = vld [vmem:[%s344] sm:$0xff]
        %v350 = vld [vmem:[%s344 + $0x8] sm:$0xff]
        %v351 = vld [vmem:[%s344 + $0x10] sm:$0xff]
        %v352 = vld [vmem:[%s344 + $0x18] sm:$0xff]
        %v353 = vld [vmem:[%s344 + $0x20] sm:$0xff]
        %v354 = vld [vmem:[%s344 + $0x28] sm:$0xff]
        %v355 = vld [vmem:[%s344 + $0x30] sm:$0xff]
        %v356 = vld [vmem:[%s344 + $0x38] sm:$0xff]
        %v357 = vpack.c.bf16 %v349, %v349
        %v358 = vpack.c.bf16 %v350, %v350
        %v359 = vpack.c.bf16 %v351, %v351
        %v360 = vpack.c.bf16 %v352, %v352
        %v361 = vpack.c.bf16 %v353, %v353
        %v362 = vpack.c.bf16 %v354, %v354
        %v363 = vpack.c.bf16 %v355, %v355
        %v364 = vpack.c.bf16 %v356, %v356
        %s365 = smul.addr %s24, 4
        %s366 = scalar_lea.vmem %s1, %s365
        %v367 = vld [vmem:[%s366] sm:$0xf]
        %v368 = vld [vmem:[%s2] sm:$0x1]
        %v370 = vlaneseq
        %v371 = vshrl.u32 %v370, 7
        %v372 = vsub.s32 0, %v371
        %v373 = vrot.slane %v368, %v372
        %v383 = vunpack.c.l.b16 %v357
        %v384 = vunpack.c.l.b16 %v358
        %v385 = vunpack.c.l.b16 %v359
        %v386 = vunpack.c.l.b16 %v360
        %v387 = vunpack.c.l.b16 %v361
        %v388 = vunpack.c.l.b16 %v362
        %v389 = vunpack.c.l.b16 %v363
        %v390 = vunpack.c.l.b16 %v364
        %v391 = vpack.c.b16 %v384, %v383
        %v392 = vpack.c.b16 %v386, %v385
        %v393 = vpack.c.b16 %v388, %v387
        %v394 = vpack.c.b16 %v390, %v389
        %vm395 = vcmask 64512
        %v397 = vsel %vm395, %v391, 0
        %v400 = vsel %vm395, %v392, 0
        %v403 = vsel %vm395, %v393, 0
        %v406 = vsel %vm395, %v394, 0
        %vm408 = vcmask 1043456
        %v410 = vsel %vm408, %v367, 0
        %412 = vmatprep.subr.bf16.mxu0 0
        %413 = vmatpush1.bf16.msra.mxu0 0
        %414 = vmatprep.subr.bf16.mxu0 0
        %415 = vmatpush1.bf16.msra.mxu0 0
        %416 = vmatprep.subr.bf16.mxu0 0
        %417 = vmatpush1.bf16.msra.mxu0 0
        %418 = vmatprep.subr.bf16.mxu0 0
        %419 = vmatpush1.bf16.msra.mxu0 0
        %420 = vmatprep.subr.bf16.mxu0 0
        %421 = vmatpush1.bf16.msra.mxu0 0
        %422 = vmatprep.subr.bf16.mxu0 0
        %423 = vmatpush1.bf16.msra.mxu0 0
        %424 = vmatprep.subr.bf16.mxu0 0
        %425 = vmatpush1.bf16.msra.mxu0 0
        %426 = vmatprep.subr.bf16.mxu0 0
        %427 = vmatpush1.bf16.msra.mxu0 %v410
        %428 = vmatprep.subr.bf16.mxu0 0
        %429 = vmatpush2.bf16.msra.mxu0 0
        %430 = vmatprep.subr.bf16.mxu0 0
        %431 = vmatpush2.bf16.msra.mxu0 0
        %432 = vmatprep.subr.bf16.mxu0 0
        %433 = vmatpush2.bf16.msra.mxu0 0
        %434 = vmatprep.subr.bf16.mxu0 0
        %435 = vmatpush2.bf16.msra.mxu0 0
        %436 = vmatprep.subr.bf16.mxu0 0
        %437 = vmatpush2.bf16.msra.mxu0 0
        %438 = vmatprep.subr.bf16.mxu0 0
        %439 = vmatpush2.bf16.msra.mxu0 0
        %440 = vmatprep.subr.bf16.mxu0 0
        %441 = vmatpush2.bf16.msra.mxu0 0
        %442 = vmatprep.subr.bf16.mxu0 0
        %443 = vmatpush2.bf16.msra.mxu0 0
        %444 = vmatprep.mubr.bf16.mxu0 0
        %445 = vmatmul.mubr.bf16.gmra.mxu0 %v397
        %v446 = vpop.f32.mrf.mxu0
        %v447 = vadd.f32 %v373, %v446
        %v448 = vpop.f32.mrf.mxu0
        %v449 = vpop.f32.mrf.mxu0
        %v450 = vadd.f32 %v373, %v449
        %v451 = vpop.f32.mrf.mxu0
        %452 = vmatprep.mubr.bf16.mxu0 0
        %453 = vmatmul.mubr.bf16.gmra.mxu0 %v400
        %v454 = vpop.f32.mrf.mxu0
        %v455 = vadd.f32 %v373, %v454
        %v456 = vpop.f32.mrf.mxu0
        %v457 = vpop.f32.mrf.mxu0
        %v458 = vadd.f32 %v373, %v457
        %v459 = vpop.f32.mrf.mxu0
        %460 = vmatprep.mubr.bf16.mxu0 0
        %461 = vmatmul.mubr.bf16.gmra.mxu0 %v403
        %v462 = vpop.f32.mrf.mxu0
        %v463 = vadd.f32 %v373, %v462
        %v464 = vpop.f32.mrf.mxu0
        %v465 = vpop.f32.mrf.mxu0
        %v466 = vadd.f32 %v373, %v465
        %v467 = vpop.f32.mrf.mxu0
        %468 = vmatprep.mubr.bf16.mxu0 0
        %469 = vmatmul.mubr.bf16.gmra.mxu0 %v406
        %v470 = vpop.f32.mrf.mxu0
        %v471 = vadd.f32 %v373, %v470
        %v472 = vpop.f32.mrf.mxu0
        %v473 = vpop.f32.mrf.mxu0
        %v474 = vadd.f32 %v373, %v473
        %v475 = vpop.f32.mrf.mxu0
        %476 = vdwg.mxu0
        %v477 = vld [vmem:[%s299] sm:$0xff]
        %v478 = vld [vmem:[%s299 + $0x8] sm:$0xff]
        %v479 = vld [vmem:[%s299 + $0x10] sm:$0xff]
        %v480 = vld [vmem:[%s299 + $0x18] sm:$0xff]
        %v481 = vld [vmem:[%s299 + $0x20] sm:$0xff]
        %v482 = vld [vmem:[%s299 + $0x28] sm:$0xff]
        %v483 = vld [vmem:[%s299 + $0x30] sm:$0xff]
        %v484 = vld [vmem:[%s299 + $0x38] sm:$0xff]
        %vm485 = vcmask 31744
        %486 = vst.msk [vmem:[%s332] sm:$0xff] %vm485, %v477
        %487 = vst.msk [vmem:[%s332 + $0x8] sm:$0xff] %vm485, %v478
        %488 = vst.msk [vmem:[%s332 + $0x10] sm:$0xff] %vm485, %v479
        %489 = vst.msk [vmem:[%s332 + $0x18] sm:$0xff] %vm485, %v480
        %490 = vst.msk [vmem:[%s332 + $0x20] sm:$0xff] %vm485, %v481
        %491 = vst.msk [vmem:[%s332 + $0x28] sm:$0xff] %vm485, %v482
        %492 = vst.msk [vmem:[%s332 + $0x30] sm:$0xff] %vm485, %v483
        %493 = vst.msk [vmem:[%s332 + $0x38] sm:$0xff] %vm485, %v484
        %502 = vrot.lane.b32.xlu0 %v447, 4
        %v503 = vpop.permute.xlu0 %502
        %504 = vrot.lane.b32.xlu0 %v450, 4
        %v505 = vpop.permute.xlu0 %504
        %506 = vrot.lane.b32.xlu0 %v455, 4
        %v507 = vpop.permute.xlu0 %506
        %508 = vrot.lane.b32.xlu0 %v458, 4
        %v509 = vpop.permute.xlu0 %508
        %510 = vrot.lane.b32.xlu0 %v463, 4
        %v511 = vpop.permute.xlu0 %510
        %512 = vrot.lane.b32.xlu0 %v466, 4
        %v513 = vpop.permute.xlu0 %512
        %514 = vrot.lane.b32.xlu0 %v471, 4
        %v515 = vpop.permute.xlu0 %514
        %516 = vrot.lane.b32.xlu0 %v474, 4
        %v517 = vpop.permute.xlu0 %516
        %vm526 = vcmask 64544
        %527 = vst.msk [vmem:[%s332] sm:$0xff] %vm526, %v503
        %528 = vst.msk [vmem:[%s332 + $0x8] sm:$0xff] %vm526, %v505
        %529 = vst.msk [vmem:[%s332 + $0x10] sm:$0xff] %vm526, %v507
        %530 = vst.msk [vmem:[%s332 + $0x18] sm:$0xff] %vm526, %v509
        %531 = vst.msk [vmem:[%s332 + $0x20] sm:$0xff] %vm526, %v511
        %532 = vst.msk [vmem:[%s332 + $0x28] sm:$0xff] %vm526, %v513
        %533 = vst.msk [vmem:[%s332 + $0x30] sm:$0xff] %vm526, %v515
        %534 = vst.msk [vmem:[%s332 + $0x38] sm:$0xff] %vm526, %v517
        %543 = vrot.lane.b32.xlu0 %v477, 4
        %v544 = vpop.permute.xlu0 %543
        %545 = vrot.lane.b32.xlu0 %v478, 4
        %v546 = vpop.permute.xlu0 %545
        %547 = vrot.lane.b32.xlu0 %v479, 4
        %v548 = vpop.permute.xlu0 %547
        %549 = vrot.lane.b32.xlu0 %v480, 4
        %v550 = vpop.permute.xlu0 %549
        %551 = vrot.lane.b32.xlu0 %v481, 4
        %v552 = vpop.permute.xlu0 %551
        %553 = vrot.lane.b32.xlu0 %v482, 4
        %v554 = vpop.permute.xlu0 %553
        %555 = vrot.lane.b32.xlu0 %v483, 4
        %v556 = vpop.permute.xlu0 %555
        %557 = vrot.lane.b32.xlu0 %v484, 4
        %v558 = vpop.permute.xlu0 %557
        %vm567 = vcmask 97344
        %568 = vst.msk [vmem:[%s332] sm:$0xff] %vm567, %v544
        %569 = vst.msk [vmem:[%s332 + $0x8] sm:$0xff] %vm567, %v546
        %570 = vst.msk [vmem:[%s332 + $0x10] sm:$0xff] %vm567, %v548
        %571 = vst.msk [vmem:[%s332 + $0x18] sm:$0xff] %vm567, %v550
        %572 = vst.msk [vmem:[%s332 + $0x20] sm:$0xff] %vm567, %v552
        %573 = vst.msk [vmem:[%s332 + $0x28] sm:$0xff] %vm567, %v554
        %574 = vst.msk [vmem:[%s332 + $0x30] sm:$0xff] %vm567, %v556
        %575 = vst.msk [vmem:[%s332 + $0x38] sm:$0xff] %vm567, %v558
        %576 = vrot.lane.b32.xlu0 %v447, 8
        %v577 = vpop.permute.xlu0 %576
        %578 = vrot.lane.b32.xlu0 %v450, 8
        %v579 = vpop.permute.xlu0 %578
        %580 = vrot.lane.b32.xlu0 %v455, 8
        %v581 = vpop.permute.xlu0 %580
        %582 = vrot.lane.b32.xlu0 %v458, 8
        %v583 = vpop.permute.xlu0 %582
        %584 = vrot.lane.b32.xlu0 %v463, 8
        %v585 = vpop.permute.xlu0 %584
        %586 = vrot.lane.b32.xlu0 %v466, 8
        %v587 = vpop.permute.xlu0 %586
        %588 = vrot.lane.b32.xlu0 %v471, 8
        %v589 = vpop.permute.xlu0 %588
        %590 = vrot.lane.b32.xlu0 %v474, 8
        %v591 = vpop.permute.xlu0 %590
        %vm600 = vcmask 130144
        %601 = vst.msk [vmem:[%s332] sm:$0xff] %vm600, %v577
        %602 = vst.msk [vmem:[%s332 + $0x8] sm:$0xff] %vm600, %v579
        %603 = vst.msk [vmem:[%s332 + $0x10] sm:$0xff] %vm600, %v581
        %604 = vst.msk [vmem:[%s332 + $0x18] sm:$0xff] %vm600, %v583
        %605 = vst.msk [vmem:[%s332 + $0x20] sm:$0xff] %vm600, %v585
        %606 = vst.msk [vmem:[%s332 + $0x28] sm:$0xff] %vm600, %v587
        %607 = vst.msk [vmem:[%s332 + $0x30] sm:$0xff] %vm600, %v589
        %608 = vst.msk [vmem:[%s332 + $0x38] sm:$0xff] %vm600, %v591
        %s609 = sand.u32 %s159, 1
        %s610 = sand.u32 %s159, 1
        %s611 = smul.addr %s610, 64
        %s612 = scalar_lea.vmem [#allocation3], %s611
        // Predicated region
        $region75: #{upcat_forward.1} parent=69 // pred_check
          %p613 = pneg %p169
        $region76: #{upcat_forward.1} parent=69 // pred_check_branch
          %615 = sbr.rel (%p613) target = $region78
        $region77: #{upcat_forward.1} parent=69 // pred_region
          %s616 = smul.u32 8, %s22
          %s617 = sadd.s32 %s23, %s24
          %s618 = smul.addr %s616, 2
          %s619 = sadd.s32 %s617, %s618
          %s620 = smul.addr %s21, 16
          %s621 = sadd.s32 %s619, %s620
          %s622 = smul.addr %s621, 8
          %s623 = scalar_lea.vmem %s4, %s622
          // Predicated region
          $region79: #{upcat_forward.1} parent=77 // pred_check
            _
          $region80: #{upcat_forward.1} parent=77 // pred_check_branch
            %625 = sbr.rel (0) target = $region82
          $region81: #{upcat_forward.1} parent=77 // pred_region
            // Predicated region
            $region83: #{upcat_forward.1} parent=81 // pred_check
              _
            $region84: #{upcat_forward.1} parent=81 // pred_check_branch
              %627 = sbr.rel (0) target = $region86
            $region85: #{upcat_forward.1} parent=81 // pred_region
              // Predicated region
              $region98: #{upcat_forward.1} parent=85 // pred_check
                _
              $region99: #{upcat_forward.1} parent=85 // pred_check_branch
                %657 = sbr.rel (0) target = $region101
              $region100: #{upcat_forward.1} parent=85 // pred_region
                loop: start=0, step=1, limit=1
                $region102: #{upcat_forward.1} parent=100 // loop_pre_header
                  _
                $region103: #{upcat_forward.1} parent=100 // loop_header
                  %s659 = sphi 0, %s663
                  %p660 = scmp.ge.s32.totalorder %s659, 1
                  %s664 = sphi %s612, %s612
                  %s665 = sphi %s623, %s623
                $region104: #{upcat_forward.1} parent=100 // loop_header_branch
                  %662 = sbr.rel (%p660) target = $region108
                $region105: #{upcat_forward.1} parent=100 // loop_body
                  %v666 = vld [vmem:[%s664] sm:$0xff]
                  %667 = vst [vmem:[%s665] sm:$0xff] %v666
                  %v668 = vld [vmem:[%s664 + $0x8] sm:$0xff]
                  %669 = vst [vmem:[%s665 + $0x10] sm:$0xff] %v668
                  %v670 = vld [vmem:[%s664 + $0x10] sm:$0xff]
                  %671 = vst [vmem:[%s665 + $0x20] sm:$0xff] %v670
                  %v672 = vld [vmem:[%s664 + $0x18] sm:$0xff]
                  %673 = vst [vmem:[%s665 + $0x30] sm:$0xff] %v672
                  %v674 = vld [vmem:[%s664 + $0x20] sm:$0xff]
                  %675 = vst [vmem:[%s665 + $0x40] sm:$0xff] %v674
                  %v676 = vld [vmem:[%s664 + $0x28] sm:$0xff]
                  %677 = vst [vmem:[%s665 + $0x50] sm:$0xff] %v676
                  %v678 = vld [vmem:[%s664 + $0x30] sm:$0xff]
                  %679 = vst [vmem:[%s665 + $0x60] sm:$0xff] %v678
                  %v680 = vld [vmem:[%s664 + $0x38] sm:$0xff]
                  %681 = vst [vmem:[%s665 + $0x70] sm:$0xff] %v680
                $region106: #{upcat_forward.1} parent=100 // loop_footer
                  %s663 = sadd.s32 1, %s659
                $region107: #{upcat_forward.1} parent=100 // loop_footer_branch
                  %658 = sbr.rel target = $region103
                $region108: #{upcat_forward.1} parent=100 // loop_exit
                  _
              $region101: #{upcat_forward.1} parent=85 // pred_fallthru
                _
              // Predicated region
              $region109: #{upcat_forward.1} parent=85 // pred_check
                _
              $region110: #{upcat_forward.1} parent=85 // pred_check_branch
                %683 = sbr.rel target = $region112
              $region111: #{upcat_forward.1} parent=85 // pred_region
                _
              $region112: #{upcat_forward.1} parent=85 // pred_fallthru
                _
            $region86: #{upcat_forward.1} parent=81 // pred_fallthru
              _
            // Predicated region
            $region87: #{upcat_forward.1} parent=81 // pred_check
              _
            $region88: #{upcat_forward.1} parent=81 // pred_check_branch
              %629 = sbr.rel target = $region90
            $region89: #{upcat_forward.1} parent=81 // pred_region
              %s631 = ssub.s32 256, 1
              loop: start=0, step=1, limit=1
              $region91: #{upcat_forward.1} parent=89 // loop_pre_header
                _
              $region92: #{upcat_forward.1} parent=89 // loop_header
                %s633 = sphi 0, %s637
                %p634 = scmp.ge.s32.totalorder %s633, 1
                %s638 = sphi %s612, %s612
                %s639 = sphi %s623, %s623
              $region93: #{upcat_forward.1} parent=89 // loop_header_branch
                %636 = sbr.rel (%p634) target = $region97
              $region94: #{upcat_forward.1} parent=89 // loop_body
                %v640 = vld [vmem:[%s638] sm:%s631]
                %641 = vst [vmem:[%s639] sm:%s631] %v640
                %v642 = vld [vmem:[%s638 + $0x8] sm:%s631]
                %643 = vst [vmem:[%s639 + $0x10] sm:%s631] %v642
                %v644 = vld [vmem:[%s638 + $0x10] sm:%s631]
                %645 = vst [vmem:[%s639 + $0x20] sm:%s631] %v644
                %v646 = vld [vmem:[%s638 + $0x18] sm:%s631]
                %647 = vst [vmem:[%s639 + $0x30] sm:%s631] %v646
                %v648 = vld [vmem:[%s638 + $0x20] sm:%s631]
                %649 = vst [vmem:[%s639 + $0x40] sm:%s631] %v648
                %v650 = vld [vmem:[%s638 + $0x28] sm:%s631]
                %651 = vst [vmem:[%s639 + $0x50] sm:%s631] %v650
                %v652 = vld [vmem:[%s638 + $0x30] sm:%s631]
                %653 = vst [vmem:[%s639 + $0x60] sm:%s631] %v652
                %v654 = vld [vmem:[%s638 + $0x38] sm:%s631]
                %655 = vst [vmem:[%s639 + $0x70] sm:%s631] %v654
              $region95: #{upcat_forward.1} parent=89 // loop_footer
                %s637 = sadd.s32 1, %s633
              $region96: #{upcat_forward.1} parent=89 // loop_footer_branch
                %632 = sbr.rel target = $region92
              $region97: #{upcat_forward.1} parent=89 // loop_exit
                _
            $region90: #{upcat_forward.1} parent=81 // pred_fallthru
              _
          $region82: #{upcat_forward.1} parent=77 // pred_fallthru
            _
          %684 = vnop
        $region78: #{upcat_forward.1} parent=69 // pred_fallthru
          _
      $region70: #{upcat_forward.1} parent=5 // pred_fallthru
        _
      %p685 = scmp.le.s32.totalorder 2, %s10
      // Predicated region
      $region113: #{upcat_forward.1} parent=5 // pred_check
        %p686 = pneg %p685
      $region114: #{upcat_forward.1} parent=5 // pred_check_branch
        %688 = sbr.rel (%p686) target = $region116
      $region115: #{upcat_forward.1} parent=5 // pred_region
        %s689 = ssub.s32 %s10, 2
        // Predicated region
        $region117: #{upcat_forward.1} parent=115 // pred_check
          %p690 = pneg %p175
        $region118: #{upcat_forward.1} parent=115 // pred_check_branch
          %692 = sbr.rel (%p690) target = $region120
        $region119: #{upcat_forward.1} parent=115 // pred_region
          %s693 = sand.u32 %s160, 1
          %s694 = sand.u32 %s160, 1
          %s695 = smul.addr %s694, 64
          %s696 = scalar_lea.vmem [#allocation3], %s695
        $region120: #{upcat_forward.1} parent=115 // pred_fallthru
          _
      $region116: #{upcat_forward.1} parent=5 // pred_fallthru
        _
    $region6: #{upcat_forward.1} parent=1 // loop_footer
      %s14 = sadd.s32 1, %s10
    $region7: #{upcat_forward.1} parent=1 // loop_footer_branch
      %9 = sbr.rel target = $region3
    $region8: #{upcat_forward.1} parent=1 // loop_exit
      _

</llo_original>
